<compile_context>
chip_gen: v7x
topology: tpu7x:2x2x1
jax: 0.10.0
libtpu: 0.0.40
codegen_flags: <defaults>
</compile_context>

<pallas_src>
import jax
import jax.numpy as jnp
from jax.experimental import pallas as pl
from jax.experimental.pallas import tpu as pltpu


def _round_up(x: int, m: int) -> int:
    return ((x + m - 1) // m) * m


def _cdiv(a: int, b: int) -> int:
    return (a + b - 1) // b


# ----------------------------------------------------------------------------
# Kernel
# ----------------------------------------------------------------------------
def _make_muann_kernel(n_extra: int, s_size: int, w0: float, s0: float,
                       compute_dtype):
    inv_w0 = 1.0 / float(w0)
    inv_s0 = 1.0 / float(s0)

    def silu(a):
        return a * jax.nn.sigmoid(a)            # logistic lowers to EUP

    def kernel(stateT_ref, actionT_ref,
               w1_ref, b1_ref, w2_ref, b2_ref,
               w3y_ref, w3a_ref, b3_ref,
               *rest):
        if n_extra > 0:
            wn_ref, bn_ref = rest[0], rest[1]
            wout_ref, bout_ref, out_ref = rest[2], rest[3], rest[4]
        else:
            wn_ref = bn_ref = None
            wout_ref, bout_ref, out_ref = rest[0], rest[1], rest[2]

        def mm(w, a):
            # MXU matmul, inputs in compute_dtype, f32 accumulation.
            return jnp.dot(w.astype(compute_dtype), a.astype(compute_dtype),
                           preferred_element_type=jnp.float32)

        # --- normalize_states (feature index is now the sublane axis) -------
        x = stateT_ref[...]                                   # (S_PAD, TB) f32
        row = jax.lax.broadcasted_iota(jnp.int32, x.shape, dimension=0)
        log_mask = (row >= 2) & (row < s_size)
        # single merged select chain; log argument guarded so padded rows /
        # padded batch lanes stay finite (padded rows hit zero weight cols).
        x = jnp.where(
            row == 1, x * inv_w0 - 1.0,
            jnp.where(log_mask,
                      jnp.log(jnp.where(log_mask, x * inv_s0, 1.0)),
                      x))

        # --- MLP trunk: y^T = W^T @ x^T; biases broadcast across lanes ------
        y = silu(mm(w1_ref[...], x) + b1_ref[...])
        y = silu(mm(w2_ref[...], y) + b2_ref[...])
        # cat((y, action), -1) @ W3  ==  W3_y^T @ y^T + W3_a^T @ action^T
        y = silu(mm(w3y_ref[...], y)
                 + mm(w3a_ref[...], actionT_ref[...])
                 + b3_ref[...])

        if n_extra > 0:
            def body(i, yc):
                return silu(mm(wn_ref[i], yc) + bn_ref[i])
            y = jax.lax.fori_loop(0, n_extra, body, y, unroll=True)

        # Final layer: (8, H) @ (H, TB); keep only the single real output row
        # -> lane-dense (1, TILE_B) store (compact output).
        z = mm(wout_ref[...], y)[0:1, :] + bout_ref[...]
        out_ref[...] = 5.0 * jnp.tanh(z)

    return kernel


# ----------------------------------------------------------------------------
# Wrapper
# ----------------------------------------------------------------------------
def muann_forward(state, action, params, *, w0: float, s0: float,
                  tile_b: int = 1024, compute_dtype=jnp.bfloat16):
    """MuANN forward pass as one batch-tiled Pallas call (feature-major)."""
    (w1, b1, w2, b2, w3, b3, extras, w_out, b_out) = params
    batch, s_size = state.shape
    a_size = action.shape[1]
    hidden = w1.shape[1]
    n_extra = len(extras)

    S_PAD = _round_up(max(s_size, 2), 8)
    A_PAD = _round_up(max(a_size, 1), 8)
    H_PAD = _round_up(hidden, 8)           # hidden=32 -> no padding needed
    OUT_ROWS = 8                           # final layer rows, one sublane group

    wdt = compute_dtype

    def padT_w(w, rows, cols):             # w: (in, out) -> padded (out, in)
        wt = jnp.asarray(w, jnp.float32).T
        return jnp.pad(wt, ((0, rows - wt.shape[0]), (0, cols - wt.shape[1])))

    def padT_b(b, rows):                   # b: (1, out) -> padded (out, 1), f32
        bt = jnp.asarray(b, jnp.float32).T
        return jnp.pad(bt, ((0, rows - bt.shape[0]), (0, 0)))

    # weights in MXU input dtype; biases stay f32 (added post-accumulation)
    w1T = padT_w(w1, H_PAD, S_PAD).astype(wdt)
    b1T = padT_b(b1, H_PAD)
    w2T = padT_w(w2, H_PAD, H_PAD).astype(wdt)
    b2T = padT_b(b2, H_PAD)
    w3yT = padT_w(w3[:hidden, :], H_PAD, H_PAD).astype(wdt)
    w3aT = padT_w(w3[hidden:, :], H_PAD, A_PAD).astype(wdt)
    b3T = padT_b(b3, H_PAD)
    woutT = padT_w(w_out, OUT_ROWS, H_PAD).astype(wdt)
    boutT = jnp.asarray(b_out, jnp.float32).reshape(1, 1)

    # --- batch tiling: batch is on lanes -> TILE_B multiple of 128; force at
    # least 2 grid steps when the padded batch allows it (v7x dual TC).
    b128 = _round_up(batch, 128)
    tile_cap = max(128, _round_up(int(tile_b), 128))
    num_tiles = max(1, _cdiv(b128, tile_cap))
    if b128 >= 256:
        num_tiles = max(num_tiles, 2)
    TILE_B = _round_up(_cdiv(b128, num_tiles), 128)
    B_pad = TILE_B * num_tiles

    # Padded batch lanes use 1.0 for state so log() stays finite (those lanes
    # are sliced away afterwards; lanes never mix, so this is purely cosmetic).
    stateT = jnp.pad(jnp.asarray(state, jnp.float32).T,
                     ((0, S_PAD - s_size), (0, B_pad - batch)),
                     constant_values=1.0)
    actionT = jnp.pad(jnp.asarray(action, jnp.float32).T,
                      ((0, A_PAD - a_size), (0, B_pad - batch)))

    in_arrays = [stateT, actionT, w1T, b1T, w2T, b2T, w3yT, w3aT, b3T]
    in_specs = [
        pl.BlockSpec((S_PAD, TILE_B), lambda i: (0, i)),
        pl.BlockSpec((A_PAD, TILE_B), lambda i: (0, i)),
        pl.BlockSpec(w1T.shape, lambda i: (0, 0)),
        pl.BlockSpec(b1T.shape, lambda i: (0, 0)),
        pl.BlockSpec(w2T.shape, lambda i: (0, 0)),
        pl.BlockSpec(b2T.shape, lambda i: (0, 0)),
        pl.BlockSpec(w3yT.shape, lambda i: (0, 0)),
        pl.BlockSpec(w3aT.shape, lambda i: (0, 0)),
        pl.BlockSpec(b3T.shape, lambda i: (0, 0)),
    ]
    if n_extra > 0:
        wnT = jnp.stack([padT_w(wi, H_PAD, H_PAD) for (wi, _) in extras]).astype(wdt)
        bnT = jnp.stack([padT_b(bi, H_PAD) for (_, bi) in extras])
        in_arrays += [wnT, bnT]
        in_specs += [pl.BlockSpec(wnT.shape, lambda i: (0, 0, 0)),
                     pl.BlockSpec(bnT.shape, lambda i: (0, 0, 0))]
    in_arrays += [woutT, boutT]
    in_specs += [pl.BlockSpec(woutT.shape, lambda i: (0, 0)),
                 pl.BlockSpec(boutT.shape, lambda i: (0, 0))]

    # --- VMEM budget (everything is tiny in this layout) + cost estimate ---
    weight_bytes = sum(int(a.size) * a.dtype.itemsize for a in in_arrays[2:])
    stream_bytes = TILE_B * (S_PAD + A_PAD + 1) * 4
    act_bytes = 6 * H_PAD * TILE_B * 4
    est = 2 * stream_bytes + 2 * weight_bytes + act_bytes
    vmem_limit = int(min(max(4 * est, 16 << 20), 32 << 20))

    flops_per_col = 2 * (H_PAD * S_PAD + (2 + n_extra) * H_PAD * H_PAD
                         + H_PAD * A_PAD + OUT_ROWS * H_PAD)
    trans_per_col = (3 + n_extra) * H_PAD + max(s_size - 2, 0) + 1
    cost = pl.CostEstimate(
        flops=int(B_pad * flops_per_col),
        transcendentals=int(B_pad * trans_per_col),
        bytes_accessed=int(B_pad * (S_PAD + A_PAD + 1) * 4 + weight_bytes),
    )

    kernel = _make_muann_kernel(n_extra, s_size, w0, s0, compute_dtype)

    outT = pl.pallas_call(
        kernel,
        out_shape=jax.ShapeDtypeStruct((1, B_pad), jnp.float32),
        grid=(num_tiles,),
        in_specs=in_specs,
        out_specs=pl.BlockSpec((1, TILE_B), lambda i: (0, i)),
        compiler_params=pltpu.CompilerParams(
            dimension_semantics=("parallel",),
            vmem_limit_bytes=vmem_limit,
        ),
        cost_estimate=cost,
    )(*in_arrays)

    return outT[0, :batch].reshape(batch, 1)


# ----------------------------------------------------------------------------
# Deterministic parameter init (Xavier-uniform weights, zero biases);
# weights are stored (in_features, out_features), biases (1, out_features).
# ----------------------------------------------------------------------------
def _xavier_uniform(key, fan_in, fan_out):
    limit = jnp.sqrt(6.0 / (fan_in + fan_out))
    return jax.random.uniform(
        key, (fan_in, fan_out), dtype=jnp.float32, minval=-limit, maxval=limit
    )


def init_muann_params(key, s_size, a_size, hidden, n_layers):
    keys = jax.random.split(key, 4 + max(n_layers - 3, 0))
    ki = iter(keys)
    w1 = _xavier_uniform(next(ki), s_size, hidden)
    b1 = jnp.zeros((1, hidden), jnp.float32)
    w2 = _xavier_uniform(next(ki), hidden, hidden)
    b2 = jnp.zeros((1, hidden), jnp.float32)
    w3 = _xavier_uniform(next(ki), hidden + a_size, hidden)
    b3 = jnp.zeros((1, hidden), jnp.float32)
    extras = []
    for _ in range(n_layers - 3):
        wi = _xavier_uniform(next(ki), hidden, hidden)
        bi = jnp.zeros((1, hidden), jnp.float32)
        extras.append((wi, bi))
    w_out = _xavier_uniform(next(ki), hidden, 1)
    b_out = jnp.zeros((1, 1), jnp.float32)
    return (w1, b1, w2, b2, w3, b3, extras, w_out, b_out)


# ----------------------------------------------------------------------------
# Pure-JAX reference (for sanity check)
# ----------------------------------------------------------------------------
def muann_reference(state, action, params, *, w0, s0):
    (w1, b1, w2, b2, w3, b3, extras, w_out, b_out) = params
    col = jnp.arange(state.shape[-1])
    x = jnp.where(col == 1, state / w0 - 1.0, state)
    x = jnp.where(col >= 2, jnp.log(jnp.where(col >= 2, state / s0, 1.0)), x)
    silu = lambda a: a * jax.nn.sigmoid(a)
    y = silu(x @ w1 + b1)
    y = silu(y @ w2 + b2)
    y = silu(jnp.concatenate([y, action], axis=-1) @ w3 + b3)
    for (wi, bi) in extras:
        y = silu(y @ wi + bi)
    return 5.0 * jnp.tanh(y @ w_out + b_out)


# TODO(synk): the PyTorch module's Adam optimizer / StepLR scheduler are
# training-time state and are not part of the forward pass -> not translated.

# ----------------------------------------------------------------------------
if __name__ == "__main__":
    # Small shapes implied by the module: state (B, s_size), action (B, a_size).
    B, S_SIZE, A_SIZE, HIDDEN, N_LAYERS = 8, 4, 2, 32, 5
    W0, S0 = 2.0, 100.0  # env.w0 / env.S0 normalization constants

    key = jax.random.PRNGKey(0)
    kp, ks, ka, ks2, ka2 = jax.random.split(key, 5)

    params = init_muann_params(kp, S_SIZE, A_SIZE, HIDDEN, N_LAYERS)

    # state columns 2: must be positive (they go through log(x / S0))
    state = jax.random.uniform(ks, (B, S_SIZE), jnp.float32, minval=0.5, maxval=5.0)
    action = jax.random.normal(ka, (B, A_SIZE), jnp.float32)
    ref = muann_reference(state, action, params, w0=W0, s0=S0)

    # f32 MXU-input path (matches reference closely)
    out_f32 = jax.block_until_ready(
        muann_forward(state, action, params, w0=W0, s0=S0,
                      compute_dtype=jnp.float32))
    assert out_f32.shape == (B, 1)
    assert jnp.allclose(out_f32, ref, atol=1e-4, rtol=1e-4), (out_f32, ref)

    # default path: bf16 MXU inputs, f32 accumulation + f32 elementwise math
    out_def = jax.block_until_ready(
        muann_forward(state, action, params, w0=W0, s0=S0))
    assert out_def.shape == (B, 1)
    assert jnp.allclose(out_def, ref, atol=2e-1, rtol=2e-1)

    # Multi-tile batch path (grid > 1, batch padding + compact-output slicing)
    B2 = 600
    state2 = jax.random.uniform(ks2, (B2, S_SIZE), jnp.float32, minval=0.5, maxval=5.0)
    action2 = jax.random.normal(ka2, (B2, A_SIZE), jnp.float32)
    out2 = jax.block_until_ready(
        muann_forward(state2, action2, params, w0=W0, s0=S0,
                      tile_b=256, compute_dtype=jnp.float32))
    ref2 = muann_reference(state2, action2, params, w0=W0, s0=S0)
    assert out2.shape == (B2, 1)
    assert jnp.allclose(out2, ref2, atol=1e-4, rtol=1e-4)

    print("KERNEL_OK")
</pallas_src>

<mosaic_0001>
module attributes {stable_mosaic.version = 11 : i64} {
  func.func @kernel(%arg0: i32, %arg1: memref<8x128xf32, #tpu.memory_space<vmem>>, %arg2: memref<8x128xf32, #tpu.memory_space<vmem>>, %arg3: memref<32x8xf32, #tpu.memory_space<vmem>>, %arg4: memref<32x1xf32, #tpu.memory_space<vmem>>, %arg5: memref<32x32xf32, #tpu.memory_space<vmem>>, %arg6: memref<32x1xf32, #tpu.memory_space<vmem>>, %arg7: memref<32x32xf32, #tpu.memory_space<vmem>>, %arg8: memref<32x8xf32, #tpu.memory_space<vmem>>, %arg9: memref<32x1xf32, #tpu.memory_space<vmem>>, %arg10: memref<2x32x32xf32, #tpu.memory_space<vmem>>, %arg11: memref<2x32x1xf32, #tpu.memory_space<vmem>>, %arg12: memref<8x32xf32, #tpu.memory_space<vmem>>, %arg13: memref<1x1xf32, #tpu.memory_space<vmem>>, %arg14: memref<1x128xf32, #tpu.memory_space<vmem>>) attributes {dimension_semantics = [#tpu.dimension_semantics<parallel>], iteration_bounds = array<i64: 1>, scalar_prefetch = 0 : i64, scratch_operands = 0 : i64, tpu.core_type = #tpu.core_type<tc>, window_params = [{transform_indices = @transform_0, window_bounds = array<i64: 8, 128>}, {transform_indices = @transform_1, window_bounds = array<i64: 8, 128>}, {pipeline_mode = #tpu.pipeline_mode<synchronous>, transform_indices = @transform_2, window_bounds = array<i64: 32, 8>}, {pipeline_mode = #tpu.pipeline_mode<synchronous>, transform_indices = @transform_3, window_bounds = array<i64: 32, 1>}, {pipeline_mode = #tpu.pipeline_mode<synchronous>, transform_indices = @transform_4, window_bounds = array<i64: 32, 32>}, {pipeline_mode = #tpu.pipeline_mode<synchronous>, transform_indices = @transform_5, window_bounds = array<i64: 32, 1>}, {pipeline_mode = #tpu.pipeline_mode<synchronous>, transform_indices = @transform_6, window_bounds = array<i64: 32, 32>}, {pipeline_mode = #tpu.pipeline_mode<synchronous>, transform_indices = @transform_7, window_bounds = array<i64: 32, 8>}, {pipeline_mode = #tpu.pipeline_mode<synchronous>, transform_indices = @transform_8, window_bounds = array<i64: 32, 1>}, {pipeline_mode = #tpu.pipeline_mode<synchronous>, transform_indices = @transform_9, window_bounds = array<i64: 2, 32, 32>}, {pipeline_mode = #tpu.pipeline_mode<synchronous>, transform_indices = @transform_10, window_bounds = array<i64: 2, 32, 1>}, {pipeline_mode = #tpu.pipeline_mode<synchronous>, transform_indices = @transform_11, window_bounds = array<i64: 8, 32>}, {pipeline_mode = #tpu.pipeline_mode<synchronous>, transform_indices = @transform_12, window_bounds = array<i64: 1, 1>}, {transform_indices = @transform_13, window_bounds = array<i64: 1, 128>}]} {
    %c0 = arith.constant 0 : index
    %c0_0 = arith.constant 0 : index
    %0 = vector.load %arg1[%c0, %c0_0] : memref<8x128xf32, #tpu.memory_space<vmem>>, vector<8x128xf32>
    %1 = tpu.iota {dimensions = array<i32: 0>} : vector<8x128xi32>
    %c2_i32 = arith.constant 2 : i32
    %2 = vector.broadcast %c2_i32 : i32 to vector<8x128xi32>
    %3 = arith.cmpi sge, %1, %2 : vector<8x128xi32>
    %c4_i32 = arith.constant 4 : i32
    %4 = vector.broadcast %c4_i32 : i32 to vector<8x128xi32>
    %5 = arith.cmpi slt, %1, %4 : vector<8x128xi32>
    %6 = arith.andi %3, %5 : vector<8x128xi1>
    %c1_i32 = arith.constant 1 : i32
    %7 = vector.broadcast %c1_i32 : i32 to vector<8x128xi32>
    %8 = arith.cmpi eq, %1, %7 : vector<8x128xi32>
    %cst = arith.constant 5.000000e-01 : f32
    %9 = vector.broadcast %cst : f32 to vector<8x128xf32>
    %10 = arith.mulf %0, %9 : vector<8x128xf32>
    %cst_1 = arith.constant 1.000000e+00 : f32
    %11 = vector.broadcast %cst_1 : f32 to vector<8x128xf32>
    %12 = arith.subf %10, %11 : vector<8x128xf32>
    %cst_2 = arith.constant 0.00999999977 : f32
    %13 = vector.broadcast %cst_2 : f32 to vector<8x128xf32>
    %14 = arith.mulf %0, %13 : vector<8x128xf32>
    %cst_3 = arith.constant 1.000000e+00 : f32
    %15 = vector.broadcast %cst_3 : f32 to vector<8x128xf32>
    %16 = arith.select %6, %14, %15 : vector<8x128xi1>, vector<8x128xf32>
    %17 = math.log %16 : vector<8x128xf32>
    %18 = arith.select %6, %17, %0 : vector<8x128xi1>, vector<8x128xf32>
    %19 = arith.select %8, %12, %18 : vector<8x128xi1>, vector<8x128xf32>
    %c0_4 = arith.constant 0 : index
    %c0_5 = arith.constant 0 : index
    %20 = vector.load %arg3[%c0_4, %c0_5] : memref<32x8xf32, #tpu.memory_space<vmem>>, vector<32x8xf32>
    %cst_6 = arith.constant dense<0.000000e+00> : vector<32x128xf32>
    %21 = tpu.matmul %20, %19, %cst_6 {dimension_numbers = #tpu.dot_dimension_numbers<[1], [0], [0], [1], [0, 0, 1, 1], [], []>} : vector<32x8xf32>, vector<8x128xf32>, vector<32x128xf32> -> vector<32x128xf32>
    %c0_7 = arith.constant 0 : index
    %c0_8 = arith.constant 0 : index
    %22 = vector.load %arg4[%c0_7, %c0_8] : memref<32x1xf32, #tpu.memory_space<vmem>>, vector<32x1xf32>
    %23 = vector.broadcast %22 : vector<32x1xf32> to vector<32x128xf32>
    %24 = arith.addf %21, %23 : vector<32x128xf32>
    %25 = arith.negf %24 : vector<32x128xf32>
    %26 = math.exp %25 : vector<32x128xf32>
    %cst_9 = arith.constant 1.000000e+00 : f32
    %27 = vector.broadcast %cst_9 : f32 to vector<32x128xf32>
    %28 = arith.addf %27, %26 : vector<32x128xf32>
    %29 = arith.divf %27, %28 : vector<32x128xf32>
    %30 = arith.mulf %24, %29 : vector<32x128xf32>
    %c0_10 = arith.constant 0 : index
    %c0_11 = arith.constant 0 : index
    %31 = vector.load %arg5[%c0_10, %c0_11] : memref<32x32xf32, #tpu.memory_space<vmem>>, vector<32x32xf32>
    %cst_12 = arith.constant dense<0.000000e+00> : vector<32x128xf32>
    %32 = tpu.matmul %31, %30, %cst_12 {dimension_numbers = #tpu.dot_dimension_numbers<[1], [0], [0], [1], [0, 0, 1, 1], [], []>} : vector<32x32xf32>, vector<32x128xf32>, vector<32x128xf32> -> vector<32x128xf32>
    %c0_13 = arith.constant 0 : index
    %c0_14 = arith.constant 0 : index
    %33 = vector.load %arg6[%c0_13, %c0_14] : memref<32x1xf32, #tpu.memory_space<vmem>>, vector<32x1xf32>
    %34 = vector.broadcast %33 : vector<32x1xf32> to vector<32x128xf32>
    %35 = arith.addf %32, %34 : vector<32x128xf32>
    %36 = arith.negf %35 : vector<32x128xf32>
    %37 = math.exp %36 : vector<32x128xf32>
    %cst_15 = arith.constant 1.000000e+00 : f32
    %38 = vector.broadcast %cst_15 : f32 to vector<32x128xf32>
    %39 = arith.addf %38, %37 : vector<32x128xf32>
    %40 = arith.divf %38, %39 : vector<32x128xf32>
    %41 = arith.mulf %35, %40 : vector<32x128xf32>
    %c0_16 = arith.constant 0 : index
    %c0_17 = arith.constant 0 : index
    %42 = vector.load %arg7[%c0_16, %c0_17] : memref<32x32xf32, #tpu.memory_space<vmem>>, vector<32x32xf32>
    %cst_18 = arith.constant dense<0.000000e+00> : vector<32x128xf32>
    %43 = tpu.matmul %42, %41, %cst_18 {dimension_numbers = #tpu.dot_dimension_numbers<[1], [0], [0], [1], [0, 0, 1, 1], [], []>} : vector<32x32xf32>, vector<32x128xf32>, vector<32x128xf32> -> vector<32x128xf32>
    %c0_19 = arith.constant 0 : index
    %c0_20 = arith.constant 0 : index
    %44 = vector.load %arg8[%c0_19, %c0_20] : memref<32x8xf32, #tpu.memory_space<vmem>>, vector<32x8xf32>
    %c0_21 = arith.constant 0 : index
    %c0_22 = arith.constant 0 : index
    %45 = vector.load %arg2[%c0_21, %c0_22] : memref<8x128xf32, #tpu.memory_space<vmem>>, vector<8x128xf32>
    %cst_23 = arith.constant dense<0.000000e+00> : vector<32x128xf32>
    %46 = tpu.matmul %44, %45, %cst_23 {dimension_numbers = #tpu.dot_dimension_numbers<[1], [0], [0], [1], [0, 0, 1, 1], [], []>} : vector<32x8xf32>, vector<8x128xf32>, vector<32x128xf32> -> vector<32x128xf32>
    %47 = arith.addf %43, %46 : vector<32x128xf32>
    %c0_24 = arith.constant 0 : index
    %c0_25 = arith.constant 0 : index
    %48 = vector.load %arg9[%c0_24, %c0_25] : memref<32x1xf32, #tpu.memory_space<vmem>>, vector<32x1xf32>
    %49 = vector.broadcast %48 : vector<32x1xf32> to vector<32x128xf32>
    %50 = arith.addf %47, %49 : vector<32x128xf32>
    %51 = arith.negf %50 : vector<32x128xf32>
    %52 = math.exp %51 : vector<32x128xf32>
    %cst_26 = arith.constant 1.000000e+00 : f32
    %53 = vector.broadcast %cst_26 : f32 to vector<32x128xf32>
    %54 = arith.addf %53, %52 : vector<32x128xf32>
    %55 = arith.divf %53, %54 : vector<32x128xf32>
    %56 = arith.mulf %50, %55 : vector<32x128xf32>
    %c0_i32 = arith.constant 0 : i32
    %57 = arith.index_cast %c0_i32 : i32 to index
    %c0_27 = arith.constant 0 : index
    %c0_28 = arith.constant 0 : index
    %58 = vector.load %arg10[%57, %c0_27, %c0_28] : memref<2x32x32xf32, #tpu.memory_space<vmem>>, vector<1x32x32xf32>
    %59 = vector.shape_cast %58 : vector<1x32x32xf32> to vector<32x32xf32>
    %cst_29 = arith.constant dense<0.000000e+00> : vector<32x128xf32>
    %60 = tpu.matmul %59, %56, %cst_29 {dimension_numbers = #tpu.dot_dimension_numbers<[1], [0], [0], [1], [0, 0, 1, 1], [], []>} : vector<32x32xf32>, vector<32x128xf32>, vector<32x128xf32> -> vector<32x128xf32>
    %61 = arith.index_cast %c0_i32 : i32 to index
    %c0_30 = arith.constant 0 : index
    %c0_31 = arith.constant 0 : index
    %62 = vector.load %arg11[%61, %c0_30, %c0_31] : memref<2x32x1xf32, #tpu.memory_space<vmem>>, vector<1x32x1xf32>
    %63 = vector.shape_cast %62 : vector<1x32x1xf32> to vector<32x1xf32>
    %64 = vector.broadcast %63 : vector<32x1xf32> to vector<32x128xf32>
    %65 = arith.addf %60, %64 : vector<32x128xf32>
    %66 = arith.negf %65 : vector<32x128xf32>
    %67 = math.exp %66 : vector<32x128xf32>
    %cst_32 = arith.constant 1.000000e+00 : f32
    %68 = vector.broadcast %cst_32 : f32 to vector<32x128xf32>
    %69 = arith.addf %68, %67 : vector<32x128xf32>
    %70 = arith.divf %68, %69 : vector<32x128xf32>
    %71 = arith.mulf %65, %70 : vector<32x128xf32>
    %c1_i32_33 = arith.constant 1 : i32
    %72 = arith.index_cast %c1_i32_33 : i32 to index
    %c0_34 = arith.constant 0 : index
    %c0_35 = arith.constant 0 : index
    %73 = vector.load %arg10[%72, %c0_34, %c0_35] : memref<2x32x32xf32, #tpu.memory_space<vmem>>, vector<1x32x32xf32>
    %74 = vector.shape_cast %73 : vector<1x32x32xf32> to vector<32x32xf32>
    %cst_36 = arith.constant dense<0.000000e+00> : vector<32x128xf32>
    %75 = tpu.matmul %74, %71, %cst_36 {dimension_numbers = #tpu.dot_dimension_numbers<[1], [0], [0], [1], [0, 0, 1, 1], [], []>} : vector<32x32xf32>, vector<32x128xf32>, vector<32x128xf32> -> vector<32x128xf32>
    %76 = arith.index_cast %c1_i32_33 : i32 to index
    %c0_37 = arith.constant 0 : index
    %c0_38 = arith.constant 0 : index
    %77 = vector.load %arg11[%76, %c0_37, %c0_38] : memref<2x32x1xf32, #tpu.memory_space<vmem>>, vector<1x32x1xf32>
    %78 = vector.shape_cast %77 : vector<1x32x1xf32> to vector<32x1xf32>
    %79 = vector.broadcast %78 : vector<32x1xf32> to vector<32x128xf32>
    %80 = arith.addf %75, %79 : vector<32x128xf32>
    %81 = arith.negf %80 : vector<32x128xf32>
    %82 = math.exp %81 : vector<32x128xf32>
    %cst_39 = arith.constant 1.000000e+00 : f32
    %83 = vector.broadcast %cst_39 : f32 to vector<32x128xf32>
    %84 = arith.addf %83, %82 : vector<32x128xf32>
    %85 = arith.divf %83, %84 : vector<32x128xf32>
    %86 = arith.mulf %80, %85 : vector<32x128xf32>
    %c2_i32_40 = arith.constant 2 : i32
    %c0_41 = arith.constant 0 : index
    %c0_42 = arith.constant 0 : index
    %87 = vector.load %arg12[%c0_41, %c0_42] : memref<8x32xf32, #tpu.memory_space<vmem>>, vector<8x32xf32>
    %cst_43 = arith.constant dense<0.000000e+00> : vector<8x128xf32>
    %88 = tpu.matmul %87, %86, %cst_43 {dimension_numbers = #tpu.dot_dimension_numbers<[1], [0], [0], [1], [0, 0, 1, 1], [], []>} : vector<8x32xf32>, vector<32x128xf32>, vector<8x128xf32> -> vector<8x128xf32>
    %89 = vector.extract_strided_slice %88 {offsets = [0, 0], sizes = [1, 128], strides = [1, 1]} : vector<8x128xf32> to vector<1x128xf32>
    %c0_44 = arith.constant 0 : index
    %c0_45 = arith.constant 0 : index
    %90 = vector.load %arg13[%c0_44, %c0_45] : memref<1x1xf32, #tpu.memory_space<vmem>>, vector<1x1xf32>
    %91 = vector.broadcast %90 : vector<1x1xf32> to vector<1x128xf32>
    %92 = arith.addf %89, %91 : vector<1x128xf32>
    %93 = math.tanh %92 : vector<1x128xf32>
    %cst_46 = arith.constant 5.000000e+00 : f32
    %94 = vector.broadcast %cst_46 : f32 to vector<1x128xf32>
    %95 = arith.mulf %94, %93 : vector<1x128xf32>
    %c0_47 = arith.constant 0 : index
    %c0_48 = arith.constant 0 : index
    %96 = vector.load %arg14[%c0_47, %c0_48] : memref<1x128xf32, #tpu.memory_space<vmem>>, vector<1x128xf32>
    tpu.vector_store %arg14[%c0_47, %c0_48], %95 {strides = array<i32>} : memref<1x128xf32, #tpu.memory_space<vmem>>, vector<1x128xf32>,
    return
  }
  func.func @transform_0(%arg0: i32) -> (i32, i32) {
    %c0_i32 = arith.constant 0 : i32
    %c0_i32_0 = arith.constant 0 : i32
    return %c0_i32, %arg0 : i32, i32
  }
  func.func @transform_1(%arg0: i32) -> (i32, i32) {
    %c0_i32 = arith.constant 0 : i32
    %c0_i32_0 = arith.constant 0 : i32
    return %c0_i32, %arg0 : i32, i32
  }
  func.func @transform_2(%arg0: i32) -> (i32, i32) {
    %c0_i32 = arith.constant 0 : i32
    %c0_i32_0 = arith.constant 0 : i32
    %c0_i32_1 = arith.constant 0 : i32
    return %c0_i32, %c0_i32_0 : i32, i32
  }
  func.func @transform_3(%arg0: i32) -> (i32, i32) {
    %c0_i32 = arith.constant 0 : i32
    %c0_i32_0 = arith.constant 0 : i32
    %c0_i32_1 = arith.constant 0 : i32
    return %c0_i32, %c0_i32_0 : i32, i32
  }
  func.func @transform_4(%arg0: i32) -> (i32, i32) {
    %c0_i32 = arith.constant 0 : i32
    %c0_i32_0 = arith.constant 0 : i32
    %c0_i32_1 = arith.constant 0 : i32
    return %c0_i32, %c0_i32_0 : i32, i32
  }
  func.func @transform_5(%arg0: i32) -> (i32, i32) {
    %c0_i32 = arith.constant 0 : i32
    %c0_i32_0 = arith.constant 0 : i32
    %c0_i32_1 = arith.constant 0 : i32
    return %c0_i32, %c0_i32_0 : i32, i32
  }
  func.func @transform_6(%arg0: i32) -> (i32, i32) {
    %c0_i32 = arith.constant 0 : i32
    %c0_i32_0 = arith.constant 0 : i32
    %c0_i32_1 = arith.constant 0 : i32
    return %c0_i32, %c0_i32_0 : i32, i32
  }
  func.func @transform_7(%arg0: i32) -> (i32, i32) {
    %c0_i32 = arith.constant 0 : i32
    %c0_i32_0 = arith.constant 0 : i32
    %c0_i32_1 = arith.constant 0 : i32
    return %c0_i32, %c0_i32_0 : i32, i32
  }
  func.func @transform_8(%arg0: i32) -> (i32, i32) {
    %c0_i32 = arith.constant 0 : i32
    %c0_i32_0 = arith.constant 0 : i32
    %c0_i32_1 = arith.constant 0 : i32
    return %c0_i32, %c0_i32_0 : i32, i32
  }
  func.func @transform_9(%arg0: i32) -> (i32, i32, i32) {
    %c0_i32 = arith.constant 0 : i32
    %c0_i32_0 = arith.constant 0 : i32
    %c0_i32_1 = arith.constant 0 : i32
    %c0_i32_2 = arith.constant 0 : i32
    return %c0_i32, %c0_i32_0, %c0_i32_1 : i32, i32, i32
  }
  func.func @transform_10(%arg0: i32) -> (i32, i32, i32) {
    %c0_i32 = arith.constant 0 : i32
    %c0_i32_0 = arith.constant 0 : i32
    %c0_i32_1 = arith.constant 0 : i32
    %c0_i32_2 = arith.constant 0 : i32
    return %c0_i32, %c0_i32_0, %c0_i32_1 : i32, i32, i32
  }
  func.func @transform_11(%arg0: i32) -> (i32, i32) {
    %c0_i32 = arith.constant 0 : i32
    %c0_i32_0 = arith.constant 0 : i32
    %c0_i32_1 = arith.constant 0 : i32
    return %c0_i32, %c0_i32_0 : i32, i32
  }
  func.func @transform_12(%arg0: i32) -> (i32, i32) {
    %c0_i32 = arith.constant 0 : i32
    %c0_i32_0 = arith.constant 0 : i32
    %c0_i32_1 = arith.constant 0 : i32
    return %c0_i32, %c0_i32_0 : i32, i32
  }
  func.func @transform_13(%arg0: i32) -> (i32, i32) {
    %c0_i32 = arith.constant 0 : i32
    %c0_i32_0 = arith.constant 0 : i32
    return %c0_i32, %arg0 : i32, i32
  }
}

</mosaic_0001>

<llo_original>
// kernel: tpu_custom_call.1
$region0: #{tpu_custom_call.1}
  #allocation0 [shape = 'u32[]', space=smem, size = 0x4, offset = 0x4, fixed_abs, tag = 'smem constant byte address 0x4 - core index']
  #allocation1 [shape = 'u32[144,128]{1,0:T(1,128)}', space=vmem, size = 0x12000, scoped, tag = 'internal scratch']
  #allocation2 [shape = 'f32[1,1]{1,0:T(1,128)S(1)}', space=vmem, size = 0x200, scoped, tag = 'scoped memory for tpu_custom_call.1']
  %s0 = inlined_call_operand.vmem [shape: f32[8,128], index: 0, kind: input, shape index: {}]
  %s1 = inlined_call_operand.vmem [shape: f32[8,128], index: 1, kind: input, shape index: {}]
  %s2 = inlined_call_operand.vmem [shape: f32[32,8], index: 2, kind: input, shape index: {}]
  %s3 = inlined_call_operand.vmem [shape: f32[32,1], index: 3, kind: input, shape index: {}]
  %s4 = inlined_call_operand.vmem [shape: f32[32,32], index: 4, kind: input, shape index: {}]
  %s5 = inlined_call_operand.vmem [shape: f32[32,1], index: 5, kind: input, shape index: {}]
  %s6 = inlined_call_operand.vmem [shape: f32[32,32], index: 6, kind: input, shape index: {}]
  %s7 = inlined_call_operand.vmem [shape: f32[32,8], index: 7, kind: input, shape index: {}]
  %s8 = inlined_call_operand.vmem [shape: f32[32,1], index: 8, kind: input, shape index: {}]
  %s9 = inlined_call_operand.vmem [shape: f32[2,32,32], index: 9, kind: input, shape index: {}]
  %s10 = inlined_call_operand.vmem [shape: f32[2,32,1], index: 10, kind: input, shape index: {}]
  %s11 = inlined_call_operand.vmem [shape: f32[8,32], index: 11, kind: input, shape index: {}]
  %s12 = inlined_call_operand.<no memory space> [shape: f32[1,1], index: 12, kind: input, shape index: {}]
  %s13 = inlined_call_operand.hbm [shape: f32[1,128], index: 13, kind: output, shape index: {}]
  %s14 = sld [smem:[#allocation0]]
  $region62: #{tpu_custom_call.1} parent=0
    _
  %s16 = ssub.s32 1, %s14
  %s17 = scalar_select 0, %s16, %s14
  %v18 = vstv %s12
  %19 = vst [vmem:[#allocation2] sm:$0x1] %v18
  $region1: #{tpu_custom_call.1} parent=0
    #allocation3 [shape = 'u8[512]{0}', space=vmem, size = 0x400, scoped, tag = 'output window, operand 0, single buffered']
    #allocation4 [shape = 's32[1]{0}', space=sflag, size = 0x4, scoped, tag = 'scoped memory for tpu_custom_call.1']
    %20 = vsyncpa [#allocation4], 0
    // Predicated region
    $region2: #{tpu_custom_call.1} parent=1 // pred_check
      _
    $region3: #{tpu_custom_call.1} parent=1 // pred_check_branch
      %22 = sbr.rel (0) target = $region5
    $region4: #{tpu_custom_call.1} parent=1 // pred_region
      _
    $region5: #{tpu_custom_call.1} parent=1 // pred_fallthru
      _
    // Predicated region
    $region6: #{tpu_custom_call.1} parent=1 // pred_check
      _
    $region7: #{tpu_custom_call.1} parent=1 // pred_check_branch
      %24 = sbr.rel (0) target = $region9
    $region8: #{tpu_custom_call.1} parent=1 // pred_region
      _
    $region9: #{tpu_custom_call.1} parent=1 // pred_fallthru
      _
    // Predicated region
    $region10: #{tpu_custom_call.1} parent=1 // pred_check
      _
    $region11: #{tpu_custom_call.1} parent=1 // pred_check_branch
      %26 = sbr.rel (0) target = $region13
    $region12: #{tpu_custom_call.1} parent=1 // pred_region
      _
    $region13: #{tpu_custom_call.1} parent=1 // pred_fallthru
      _
    // Predicated region
    $region14: #{tpu_custom_call.1} parent=1 // pred_check
      _
    $region15: #{tpu_custom_call.1} parent=1 // pred_check_branch
      %28 = sbr.rel (0) target = $region17
    $region16: #{tpu_custom_call.1} parent=1 // pred_region
      _
    $region17: #{tpu_custom_call.1} parent=1 // pred_fallthru
      _
    // Predicated region
    $region18: #{tpu_custom_call.1} parent=1 // pred_check
      _
    $region19: #{tpu_custom_call.1} parent=1 // pred_check_branch
      %30 = sbr.rel (0) target = $region21
    $region20: #{tpu_custom_call.1} parent=1 // pred_region
      _
    $region21: #{tpu_custom_call.1} parent=1 // pred_fallthru
      _
    // Predicated region
    $region22: #{tpu_custom_call.1} parent=1 // pred_check
      _
    $region23: #{tpu_custom_call.1} parent=1 // pred_check_branch
      %32 = sbr.rel (0) target = $region25
    $region24: #{tpu_custom_call.1} parent=1 // pred_region
      _
    $region25: #{tpu_custom_call.1} parent=1 // pred_fallthru
      _
    // Predicated region
    $region26: #{tpu_custom_call.1} parent=1 // pred_check
      _
    $region27: #{tpu_custom_call.1} parent=1 // pred_check_branch
      %34 = sbr.rel (0) target = $region29
    $region28: #{tpu_custom_call.1} parent=1 // pred_region
      _
    $region29: #{tpu_custom_call.1} parent=1 // pred_fallthru
      _
    // Predicated region
    $region30: #{tpu_custom_call.1} parent=1 // pred_check
      _
    $region31: #{tpu_custom_call.1} parent=1 // pred_check_branch
      %36 = sbr.rel (0) target = $region33
    $region32: #{tpu_custom_call.1} parent=1 // pred_region
      _
    $region33: #{tpu_custom_call.1} parent=1 // pred_fallthru
      _
    // Predicated region
    $region34: #{tpu_custom_call.1} parent=1 // pred_check
      _
    $region35: #{tpu_custom_call.1} parent=1 // pred_check_branch
      %38 = sbr.rel (0) target = $region37
    $region36: #{tpu_custom_call.1} parent=1 // pred_region
      _
    $region37: #{tpu_custom_call.1} parent=1 // pred_fallthru
      _
    // Predicated region
    $region38: #{tpu_custom_call.1} parent=1 // pred_check
      _
    $region39: #{tpu_custom_call.1} parent=1 // pred_check_branch
      %40 = sbr.rel (0) target = $region41
    $region40: #{tpu_custom_call.1} parent=1 // pred_region
      _
    $region41: #{tpu_custom_call.1} parent=1 // pred_fallthru
      _
    // Predicated region
    $region42: #{tpu_custom_call.1} parent=1 // pred_check
      _
    $region43: #{tpu_custom_call.1} parent=1 // pred_check_branch
      %42 = sbr.rel (0) target = $region45
    $region44: #{tpu_custom_call.1} parent=1 // pred_region
      _
    $region45: #{tpu_custom_call.1} parent=1 // pred_fallthru
      _
    // Predicated region
    $region46: #{tpu_custom_call.1} parent=1 // pred_check
      _
    $region47: #{tpu_custom_call.1} parent=1 // pred_check_branch
      %44 = sbr.rel (0) target = $region49
    $region48: #{tpu_custom_call.1} parent=1 // pred_region
      _
    $region49: #{tpu_custom_call.1} parent=1 // pred_fallthru
      _
    // Predicated region
    $region50: #{tpu_custom_call.1} parent=1 // pred_check
      _
    $region51: #{tpu_custom_call.1} parent=1 // pred_check_branch
      %46 = sbr.rel (0) target = $region53
    $region52: #{tpu_custom_call.1} parent=1 // pred_region
      _
    $region53: #{tpu_custom_call.1} parent=1 // pred_fallthru
      _
    %v47 = vld [vmem:[%s0] sm:$0xff]
    %v48 = vlaneseq
    %v49 = vshrl.u32 %v48, 7
    %vm50 = vcmp.ge.s32.totalorder %v49, 2
    %vm51 = vcmp.lt.s32.totalorder %v49, 4
    %vm52 = vmand %vm50, %vm51
    %vm53 = vcmp.eq.s32.totalorder %v49, 1
    %v54 = vmul.f32 %v47, 0.5
    %v55 = vsub.f32 %v54, 1.0
    %v56 = vmul.f32 %v47, 0.01
    %v57 = vsel %vm52, %v56, 1.0
    %v58 = vlog2.pop %v57
    %v59 = vmul.f32 %v58, 0.6931472
    %v60 = vsel %vm52, %v59, %v47
    %v61 = vsel %vm53, %v55, %v60
    %v62 = vld [vmem:[%s2] sm:$0xff]
    %v63 = vld [vmem:[%s2 + $0x8] sm:$0xff]
    %v64 = vld [vmem:[%s2 + $0x10] sm:$0xff]
    %v65 = vld [vmem:[%s2 + $0x18] sm:$0xff]
    %v66 = vld [vmem:[%s3] sm:$0xff]
    %v67 = vld [vmem:[%s3 + $0x8] sm:$0xff]
    %v68 = vld [vmem:[%s3 + $0x10] sm:$0xff]
    %v69 = vld [vmem:[%s3 + $0x18] sm:$0xff]
    %71 = vset.pattern.permute.xlu0 0
    %72 = vperm.xlu0 %71, %v66
    %v73 = vpop.permute.xlu0 %72
    %76 = vset.pattern.permute.xlu0 0
    %77 = vperm.xlu0 %76, %v67
    %v78 = vpop.permute.xlu0 %77
    %81 = vset.pattern.permute.xlu0 0
    %82 = vperm.xlu0 %81, %v68
    %v83 = vpop.permute.xlu0 %82
    %86 = vset.pattern.permute.xlu0 0
    %87 = vperm.xlu0 %86, %v69
    %v88 = vpop.permute.xlu0 %87
    %vm90 = vcmask 64512
    %v92 = vsel %vm90, %v62, 0
    %v95 = vsel %vm90, %v63, 0
    %v98 = vsel %vm90, %v64, 0
    %v101 = vsel %vm90, %v65, 0
    %103 = vmatprep.subr.mxu0 0.0
    %104 = vmatpush1.msra.mxu0 %v61
    %105 = vmatprep.subr.mxu0 0.0
    %106 = vmatpush1.msra.mxu0 0.0
    %107 = vmatprep.subr.mxu0 0.0
    %108 = vmatpush1.msra.mxu0 0.0
    %109 = vmatprep.subr.mxu0 0.0
    %110 = vmatpush1.msra.mxu0 0.0
    %111 = vmatprep.subr.mxu0 0.0
    %112 = vmatpush1.msra.mxu0 0.0
    %113 = vmatprep.subr.mxu0 0.0
    %114 = vmatpush1.msra.mxu0 0.0
    %115 = vmatprep.subr.mxu0 0.0
    %116 = vmatpush1.msra.mxu0 0.0
    %117 = vmatprep.subr.mxu0 0.0
    %118 = vmatpush1.msra.mxu0 0.0
    %119 = vmatprep.subr.mxu0 0.0
    %120 = vmatpush1.msra.mxu0 0.0
    %121 = vmatprep.subr.mxu0 0.0
    %122 = vmatpush1.msra.mxu0 0.0
    %123 = vmatprep.subr.mxu0 0.0
    %124 = vmatpush1.msra.mxu0 0.0
    %125 = vmatprep.subr.mxu0 0.0
    %126 = vmatpush1.msra.mxu0 0.0
    %127 = vmatprep.subr.mxu0 0.0
    %128 = vmatpush1.msra.mxu0 0.0
    %129 = vmatprep.subr.mxu0 0.0
    %130 = vmatpush1.msra.mxu0 0.0
    %131 = vmatprep.subr.mxu0 0.0
    %132 = vmatpush1.msra.mxu0 0.0
    %133 = vmatprep.subr.mxu0 0.0
    %134 = vmatpush1.msra.mxu0 0.0
    %135 = vmatprep.subr.mxu0 0.0
    %136 = vmatpush1.msra.mxu0 0.0
    %137 = vmatprep.subr.mxu0 0.0
    %138 = vmatpush1.msra.mxu0 0.0
    %139 = vmatprep.subr.mxu0 0.0
    %140 = vmatpush1.msra.mxu0 0.0
    %141 = vmatprep.subr.mxu0 0.0
    %142 = vmatpush1.msra.mxu0 0.0
    %143 = vmatprep.subr.mxu0 0.0
    %144 = vmatpush1.msra.mxu0 0.0
    %145 = vmatprep.subr.mxu0 0.0
    %146 = vmatpush1.msra.mxu0 0.0
    %147 = vmatprep.subr.mxu0 0.0
    %148 = vmatpush1.msra.mxu0 0.0
    %149 = vmatprep.subr.mxu0 0.0
    %150 = vmatpush1.msra.mxu0 0.0
    %151 = vmatprep.subr.mxu0 0.0
    %152 = vmatpush1.msra.mxu0 0.0
    %153 = vmatprep.subr.mxu0 0.0
    %154 = vmatpush1.msra.mxu0 0.0
    %155 = vmatprep.subr.mxu0 0.0
    %156 = vmatpush1.msra.mxu0 0.0
    %157 = vmatprep.subr.mxu0 0.0
    %158 = vmatpush1.msra.mxu0 0.0
    %159 = vmatprep.subr.mxu0 0.0
    %160 = vmatpush1.msra.mxu0 0.0
    %161 = vmatprep.subr.mxu0 0.0
    %162 = vmatpush1.msra.mxu0 0.0
    %163 = vmatprep.subr.mxu0 0.0
    %164 = vmatpush1.msra.mxu0 0.0
    %165 = vmatprep.subr.mxu0 0.0
    %166 = vmatpush1.msra.mxu0 0.0
    %167 = vmatprep.mubr.f32.mxu0 0.0
    %168 = vmatmul.mubr.f32.gmra.mrb[0].mxu0 %v92
    %v169 = vpop.f32.mrb[0].mxu0
    %v170 = vadd.f32 %v73, %v169
    %v171 = vpop.f32.mrb[0].mxu0
    %172 = vmatprep.mubr.f32.mxu0 0.0
    %173 = vmatmul.mubr.f32.gmra.mrb[0].mxu0 %v95
    %v174 = vpop.f32.mrb[0].mxu0
    %v175 = vadd.f32 %v78, %v174
    %v176 = vpop.f32.mrb[0].mxu0
    %177 = vmatprep.mubr.f32.mxu0 0.0
    %178 = vmatmul.mubr.f32.gmra.mrb[0].mxu0 %v98
    %v179 = vpop.f32.mrb[0].mxu0
    %v180 = vadd.f32 %v83, %v179
    %v181 = vpop.f32.mrb[0].mxu0
    %182 = vmatprep.mubr.f32.mxu0 0.0
    %183 = vmatmul.mubr.f32.gmra.mrb[0].mxu0 %v101
    %v184 = vpop.f32.mrb[0].mxu0
    %v185 = vadd.f32 %v88, %v184
    %v186 = vpop.f32.mrb[0].mxu0
    %187 = vdwg.mxu0
    %v188 = vxor.u32 %v170, 2147483648
    %v189 = vxor.u32 %v175, 2147483648
    %v190 = vxor.u32 %v180, 2147483648
    %v191 = vxor.u32 %v185, 2147483648
    %v192 = vmul.f32 %v188, 1.442695
    %v193 = vpow.pop %v192
    %v194 = vmul.f32 %v189, 1.442695
    %v195 = vpow.pop %v194
    %v196 = vmul.f32 %v190, 1.442695
    %v197 = vpow.pop %v196
    %v198 = vmul.f32 %v191, 1.442695
    %v199 = vpow.pop %v198
    %v200 = vadd.f32 %v193, 1.0
    %v201 = vadd.f32 %v195, 1.0
    %v202 = vadd.f32 %v197, 1.0
    %v203 = vadd.f32 %v199, 1.0
    %v204 = vrcp.pop %v200
    %v205 = vmul.f32 1.0, %v204
    %v206 = vrcp.pop %v201
    %v207 = vmul.f32 1.0, %v206
    %v208 = vrcp.pop %v202
    %v209 = vmul.f32 1.0, %v208
    %v210 = vrcp.pop %v203
    %v211 = vmul.f32 1.0, %v210
    %v212 = vmul.f32 %v170, %v205
    %v213 = vmul.f32 %v175, %v207
    %v214 = vmul.f32 %v180, %v209
    %v215 = vmul.f32 %v185, %v211
    %v216 = vld [vmem:[%s4] sm:$0xff]
    %v217 = vld [vmem:[%s4 + $0x8] sm:$0xff]
    %v218 = vld [vmem:[%s4 + $0x10] sm:$0xff]
    %v219 = vld [vmem:[%s4 + $0x18] sm:$0xff]
    %v220 = vld [vmem:[%s5] sm:$0xff]
    %v221 = vld [vmem:[%s5 + $0x8] sm:$0xff]
    %v222 = vld [vmem:[%s5 + $0x10] sm:$0xff]
    %v223 = vld [vmem:[%s5 + $0x18] sm:$0xff]
    %225 = vset.pattern.permute.xlu0 0
    %226 = vperm.xlu0 %225, %v220
    %v227 = vpop.permute.xlu0 %226
    %230 = vset.pattern.permute.xlu0 0
    %231 = vperm.xlu0 %230, %v221
    %v232 = vpop.permute.xlu0 %231
    %235 = vset.pattern.permute.xlu0 0
    %236 = vperm.xlu0 %235, %v222
    %v237 = vpop.permute.xlu0 %236
    %240 = vset.pattern.permute.xlu0 0
    %241 = vperm.xlu0 %240, %v223
    %v242 = vpop.permute.xlu0 %241
    %vm244 = vcmask 261120
    %v246 = vsel %vm244, %v216, 0
    %v249 = vsel %vm244, %v217, 0
    %v252 = vsel %vm244, %v218, 0
    %v255 = vsel %vm244, %v219, 0
    %257 = vmatprep.subr.mxu0 0.0
    %258 = vmatpush1.msra.mxu0 %v212
    %259 = vmatprep.subr.mxu0 0.0
    %260 = vmatpush1.msra.mxu0 %v213
    %261 = vmatprep.subr.mxu0 0.0
    %262 = vmatpush1.msra.mxu0 %v214
    %263 = vmatprep.subr.mxu0 0.0
    %264 = vmatpush1.msra.mxu0 %v215
    %265 = vmatprep.subr.mxu0 0.0
    %266 = vmatpush1.msra.mxu0 0.0
    %267 = vmatprep.subr.mxu0 0.0
    %268 = vmatpush1.msra.mxu0 0.0
    %269 = vmatprep.subr.mxu0 0.0
    %270 = vmatpush1.msra.mxu0 0.0
    %271 = vmatprep.subr.mxu0 0.0
    %272 = vmatpush1.msra.mxu0 0.0
    %273 = vmatprep.subr.mxu0 0.0
    %274 = vmatpush1.msra.mxu0 0.0
    %275 = vmatprep.subr.mxu0 0.0
    %276 = vmatpush1.msra.mxu0 0.0
    %277 = vmatprep.subr.mxu0 0.0
    %278 = vmatpush1.msra.mxu0 0.0
    %279 = vmatprep.subr.mxu0 0.0
    %280 = vmatpush1.msra.mxu0 0.0
    %281 = vmatprep.subr.mxu0 0.0
    %282 = vmatpush1.msra.mxu0 0.0
    %283 = vmatprep.subr.mxu0 0.0
    %284 = vmatpush1.msra.mxu0 0.0
    %285 = vmatprep.subr.mxu0 0.0
    %286 = vmatpush1.msra.mxu0 0.0
    %287 = vmatprep.subr.mxu0 0.0
    %288 = vmatpush1.msra.mxu0 0.0
    %289 = vmatprep.subr.mxu0 0.0
    %290 = vmatpush1.msra.mxu0 0.0
    %291 = vmatprep.subr.mxu0 0.0
    %292 = vmatpush1.msra.mxu0 0.0
    %293 = vmatprep.subr.mxu0 0.0
    %294 = vmatpush1.msra.mxu0 0.0
    %295 = vmatprep.subr.mxu0 0.0
    %296 = vmatpush1.msra.mxu0 0.0
    %297 = vmatprep.subr.mxu0 0.0
    %298 = vmatpush1.msra.mxu0 0.0
    %299 = vmatprep.subr.mxu0 0.0
    %300 = vmatpush1.msra.mxu0 0.0
    %301 = vmatprep.subr.mxu0 0.0
    %302 = vmatpush1.msra.mxu0 0.0
    %303 = vmatprep.subr.mxu0 0.0
    %304 = vmatpush1.msra.mxu0 0.0
    %305 = vmatprep.subr.mxu0 0.0
    %306 = vmatpush1.msra.mxu0 0.0
    %307 = vmatprep.subr.mxu0 0.0
    %308 = vmatpush1.msra.mxu0 0.0
    %309 = vmatprep.subr.mxu0 0.0
    %310 = vmatpush1.msra.mxu0 0.0
    %311 = vmatprep.subr.mxu0 0.0
    %312 = vmatpush1.msra.mxu0 0.0
    %313 = vmatprep.subr.mxu0 0.0
    %314 = vmatpush1.msra.mxu0 0.0
    %315 = vmatprep.subr.mxu0 0.0
    %316 = vmatpush1.msra.mxu0 0.0
    %317 = vmatprep.subr.mxu0 0.0
    %318 = vmatpush1.msra.mxu0 0.0
    %319 = vmatprep.subr.mxu0 0.0
    %320 = vmatpush1.msra.mxu0 0.0
    %321 = vmatprep.mubr.f32.mxu0 0.0
    %322 = vmatmul.mubr.f32.gmra.mrb[0].mxu0 %v246
    %v323 = vpop.f32.mrb[0].mxu0
    %v324 = vadd.f32 %v227, %v323
    %v325 = vpop.f32.mrb[0].mxu0
    %326 = vmatprep.mubr.f32.mxu0 0.0
    %327 = vmatmul.mubr.f32.gmra.mrb[0].mxu0 %v249
    %v328 = vpop.f32.mrb[0].mxu0
    %v329 = vadd.f32 %v232, %v328
    %v330 = vpop.f32.mrb[0].mxu0
    %331 = vmatprep.mubr.f32.mxu0 0.0
    %332 = vmatmul.mubr.f32.gmra.mrb[0].mxu0 %v252
    %v333 = vpop.f32.mrb[0].mxu0
    %v334 = vadd.f32 %v237, %v333
    %v335 = vpop.f32.mrb[0].mxu0
    %336 = vmatprep.mubr.f32.mxu0 0.0
    %337 = vmatmul.mubr.f32.gmra.mrb[0].mxu0 %v255
    %v338 = vpop.f32.mrb[0].mxu0
    %v339 = vadd.f32 %v242, %v338
    %v340 = vpop.f32.mrb[0].mxu0
    %341 = vdwg.mxu0
    %v342 = vxor.u32 %v324, 2147483648
    %v343 = vxor.u32 %v329, 2147483648
    %v344 = vxor.u32 %v334, 2147483648
    %v345 = vxor.u32 %v339, 2147483648
    %v346 = vmul.f32 %v342, 1.442695
    %v347 = vpow.pop %v346
    %v348 = vmul.f32 %v343, 1.442695
    %v349 = vpow.pop %v348
    %v350 = vmul.f32 %v344, 1.442695
    %v351 = vpow.pop %v350
    %v352 = vmul.f32 %v345, 1.442695
    %v353 = vpow.pop %v352
    %v354 = vadd.f32 %v347, 1.0
    %v355 = vadd.f32 %v349, 1.0
    %v356 = vadd.f32 %v351, 1.0
    %v357 = vadd.f32 %v353, 1.0
    %v358 = vrcp.pop %v354
    %v359 = vmul.f32 1.0, %v358
    %v360 = vrcp.pop %v355
    %v361 = vmul.f32 1.0, %v360
    %v362 = vrcp.pop %v356
    %v363 = vmul.f32 1.0, %v362
    %v364 = vrcp.pop %v357
    %v365 = vmul.f32 1.0, %v364
    %v366 = vmul.f32 %v324, %v359
    %v367 = vmul.f32 %v329, %v361
    %v368 = vmul.f32 %v334, %v363
    %v369 = vmul.f32 %v339, %v365
    %v370 = vld [vmem:[%s6] sm:$0xff]
    %v371 = vld [vmem:[%s6 + $0x8] sm:$0xff]
    %v372 = vld [vmem:[%s6 + $0x10] sm:$0xff]
    %v373 = vld [vmem:[%s6 + $0x18] sm:$0xff]
    %v374 = vld [vmem:[%s7] sm:$0xff]
    %v375 = vld [vmem:[%s7 + $0x8] sm:$0xff]
    %v376 = vld [vmem:[%s7 + $0x10] sm:$0xff]
    %v377 = vld [vmem:[%s7 + $0x18] sm:$0xff]
    %v378 = vld [vmem:[%s1] sm:$0xff]
    %v380 = vsel %vm90, %v374, 0
    %v383 = vsel %vm90, %v375, 0
    %v386 = vsel %vm90, %v376, 0
    %v389 = vsel %vm90, %v377, 0
    %391 = vmatprep.subr.mxu0 0.0
    %392 = vmatpush1.msra.mxu0 %v378
    %393 = vmatprep.subr.mxu0 0.0
    %394 = vmatpush1.msra.mxu0 0.0
    %395 = vmatprep.subr.mxu0 0.0
    %396 = vmatpush1.msra.mxu0 0.0
    %397 = vmatprep.subr.mxu0 0.0
    %398 = vmatpush1.msra.mxu0 0.0
    %399 = vmatprep.subr.mxu0 0.0
    %400 = vmatpush1.msra.mxu0 0.0
    %401 = vmatprep.subr.mxu0 0.0
    %402 = vmatpush1.msra.mxu0 0.0
    %403 = vmatprep.subr.mxu0 0.0
    %404 = vmatpush1.msra.mxu0 0.0
    %405 = vmatprep.subr.mxu0 0.0
    %406 = vmatpush1.msra.mxu0 0.0
    %407 = vmatprep.subr.mxu0 0.0
    %408 = vmatpush1.msra.mxu0 0.0
    %409 = vmatprep.subr.mxu0 0.0
    %410 = vmatpush1.msra.mxu0 0.0
    %411 = vmatprep.subr.mxu0 0.0
    %412 = vmatpush1.msra.mxu0 0.0
    %413 = vmatprep.subr.mxu0 0.0
    %414 = vmatpush1.msra.mxu0 0.0
    %415 = vmatprep.subr.mxu0 0.0
    %416 = vmatpush1.msra.mxu0 0.0
    %417 = vmatprep.subr.mxu0 0.0
    %418 = vmatpush1.msra.mxu0 0.0
    %419 = vmatprep.subr.mxu0 0.0
    %420 = vmatpush1.msra.mxu0 0.0
    %421 = vmatprep.subr.mxu0 0.0
    %422 = vmatpush1.msra.mxu0 0.0
    %423 = vmatprep.subr.mxu0 0.0
    %424 = vmatpush1.msra.mxu0 0.0
    %425 = vmatprep.subr.mxu0 0.0
    %426 = vmatpush1.msra.mxu0 0.0
    %427 = vmatprep.subr.mxu0 0.0
    %428 = vmatpush1.msra.mxu0 0.0
    %429 = vmatprep.subr.mxu0 0.0
    %430 = vmatpush1.msra.mxu0 0.0
    %431 = vmatprep.subr.mxu0 0.0
    %432 = vmatpush1.msra.mxu0 0.0
    %433 = vmatprep.subr.mxu0 0.0
    %434 = vmatpush1.msra.mxu0 0.0
    %435 = vmatprep.subr.mxu0 0.0
    %436 = vmatpush1.msra.mxu0 0.0
    %437 = vmatprep.subr.mxu0 0.0
    %438 = vmatpush1.msra.mxu0 0.0
    %439 = vmatprep.subr.mxu0 0.0
    %440 = vmatpush1.msra.mxu0 0.0
    %441 = vmatprep.subr.mxu0 0.0
    %442 = vmatpush1.msra.mxu0 0.0
    %443 = vmatprep.subr.mxu0 0.0
    %444 = vmatpush1.msra.mxu0 0.0
    %445 = vmatprep.subr.mxu0 0.0
    %446 = vmatpush1.msra.mxu0 0.0
    %447 = vmatprep.subr.mxu0 0.0
    %448 = vmatpush1.msra.mxu0 0.0
    %449 = vmatprep.subr.mxu0 0.0
    %450 = vmatpush1.msra.mxu0 0.0
    %451 = vmatprep.subr.mxu0 0.0
    %452 = vmatpush1.msra.mxu0 0.0
    %453 = vmatprep.subr.mxu0 0.0
    %454 = vmatpush1.msra.mxu0 0.0
    %455 = vmatprep.mubr.f32.mxu0 0.0
    %456 = vmatmul.mubr.f32.gmra.mrb[0].mxu0 %v380
    %v457 = vpop.f32.mrb[0].mxu0
    %v458 = vadd.f32 0.0, %v457
    %v459 = vpop.f32.mrb[0].mxu0
    %460 = vmatprep.mubr.f32.mxu0 0.0
    %461 = vmatmul.mubr.f32.gmra.mrb[0].mxu0 %v383
    %v462 = vpop.f32.mrb[0].mxu0
    %v463 = vadd.f32 0.0, %v462
    %v464 = vpop.f32.mrb[0].mxu0
    %465 = vmatprep.mubr.f32.mxu0 0.0
    %466 = vmatmul.mubr.f32.gmra.mrb[0].mxu0 %v386
    %v467 = vpop.f32.mrb[0].mxu0
    %v468 = vadd.f32 0.0, %v467
    %v469 = vpop.f32.mrb[0].mxu0
    %470 = vmatprep.mubr.f32.mxu0 0.0
    %471 = vmatmul.mubr.f32.gmra.mrb[0].mxu0 %v389
    %v472 = vpop.f32.mrb[0].mxu0
    %v473 = vadd.f32 0.0, %v472
    %v474 = vpop.f32.mrb[0].mxu0
    %475 = vdwg.mxu0
    %v477 = vsel %vm244, %v370, 0
    %v480 = vsel %vm244, %v371, 0
    %v483 = vsel %vm244, %v372, 0
    %v486 = vsel %vm244, %v373, 0
    %488 = vmatprep.subr.mxu0 0.0
    %489 = vmatpush1.msra.mxu0 %v366
    %490 = vmatprep.subr.mxu0 0.0
    %491 = vmatpush1.msra.mxu0 %v367
    %492 = vmatprep.subr.mxu0 0.0
    %493 = vmatpush1.msra.mxu0 %v368
    %494 = vmatprep.subr.mxu0 0.0
    %495 = vmatpush1.msra.mxu0 %v369
    %496 = vmatprep.subr.mxu0 0.0
    %497 = vmatpush1.msra.mxu0 0.0
    %498 = vmatprep.subr.mxu0 0.0
    %499 = vmatpush1.msra.mxu0 0.0
    %500 = vmatprep.subr.mxu0 0.0
    %501 = vmatpush1.msra.mxu0 0.0
    %502 = vmatprep.subr.mxu0 0.0
    %503 = vmatpush1.msra.mxu0 0.0
    %504 = vmatprep.subr.mxu0 0.0
    %505 = vmatpush1.msra.mxu0 0.0
    %506 = vmatprep.subr.mxu0 0.0
    %507 = vmatpush1.msra.mxu0 0.0
    %508 = vmatprep.subr.mxu0 0.0
    %509 = vmatpush1.msra.mxu0 0.0
    %510 = vmatprep.subr.mxu0 0.0
    %511 = vmatpush1.msra.mxu0 0.0
    %512 = vmatprep.subr.mxu0 0.0
    %513 = vmatpush1.msra.mxu0 0.0
    %514 = vmatprep.subr.mxu0 0.0
    %515 = vmatpush1.msra.mxu0 0.0
    %516 = vmatprep.subr.mxu0 0.0
    %517 = vmatpush1.msra.mxu0 0.0
    %518 = vmatprep.subr.mxu0 0.0
    %519 = vmatpush1.msra.mxu0 0.0
    %520 = vmatprep.subr.mxu0 0.0
    %521 = vmatpush1.msra.mxu0 0.0
    %522 = vmatprep.subr.mxu0 0.0
    %523 = vmatpush1.msra.mxu0 0.0
    %524 = vmatprep.subr.mxu0 0.0
    %525 = vmatpush1.msra.mxu0 0.0
    %526 = vmatprep.subr.mxu0 0.0
    %527 = vmatpush1.msra.mxu0 0.0
    %528 = vmatprep.subr.mxu0 0.0
    %529 = vmatpush1.msra.mxu0 0.0
    %530 = vmatprep.subr.mxu0 0.0
    %531 = vmatpush1.msra.mxu0 0.0
    %532 = vmatprep.subr.mxu0 0.0
    %533 = vmatpush1.msra.mxu0 0.0
    %534 = vmatprep.subr.mxu0 0.0
    %535 = vmatpush1.msra.mxu0 0.0
    %536 = vmatprep.subr.mxu0 0.0
    %537 = vmatpush1.msra.mxu0 0.0
    %538 = vmatprep.subr.mxu0 0.0
    %539 = vmatpush1.msra.mxu0 0.0
    %540 = vmatprep.subr.mxu0 0.0
    %541 = vmatpush1.msra.mxu0 0.0
    %542 = vmatprep.subr.mxu0 0.0
    %543 = vmatpush1.msra.mxu0 0.0
    %544 = vmatprep.subr.mxu0 0.0
    %545 = vmatpush1.msra.mxu0 0.0
    %546 = vmatprep.subr.mxu0 0.0
    %547 = vmatpush1.msra.mxu0 0.0
    %548 = vmatprep.subr.mxu0 0.0
    %549 = vmatpush1.msra.mxu0 0.0
    %550 = vmatprep.subr.mxu0 0.0
    %551 = vmatpush1.msra.mxu0 0.0
    %552 = vmatprep.mubr.f32.mxu0 0.0
    %553 = vmatmul.mubr.f32.gmra.mrb[0].mxu0 %v477
    %v554 = vpop.f32.mrb[0].mxu0
    %v555 = vadd.f32 %v458, %v554
    %v556 = vpop.f32.mrb[0].mxu0
    %557 = vmatprep.mubr.f32.mxu0 0.0
    %558 = vmatmul.mubr.f32.gmra.mrb[0].mxu0 %v480
    %v559 = vpop.f32.mrb[0].mxu0
    %v560 = vadd.f32 %v463, %v559
    %v561 = vpop.f32.mrb[0].mxu0
    %562 = vmatprep.mubr.f32.mxu0 0.0
    %563 = vmatmul.mubr.f32.gmra.mrb[0].mxu0 %v483
    %v564 = vpop.f32.mrb[0].mxu0
    %v565 = vadd.f32 %v468, %v564
    %v566 = vpop.f32.mrb[0].mxu0
    %567 = vmatprep.mubr.f32.mxu0 0.0
    %568 = vmatmul.mubr.f32.gmra.mrb[0].mxu0 %v486
    %v569 = vpop.f32.mrb[0].mxu0
    %v570 = vadd.f32 %v473, %v569
    %v571 = vpop.f32.mrb[0].mxu0
    %572 = vdwg.mxu0
    %v573 = vld [vmem:[%s8] sm:$0xff]
    %v574 = vld [vmem:[%s8 + $0x8] sm:$0xff]
    %v575 = vld [vmem:[%s8 + $0x10] sm:$0xff]
    %v576 = vld [vmem:[%s8 + $0x18] sm:$0xff]
    %578 = vset.pattern.permute.xlu0 0
    %579 = vperm.xlu0 %578, %v573
    %v580 = vpop.permute.xlu0 %579
    %583 = vset.pattern.permute.xlu0 0
    %584 = vperm.xlu0 %583, %v574
    %v585 = vpop.permute.xlu0 %584
    %588 = vset.pattern.permute.xlu0 0
    %589 = vperm.xlu0 %588, %v575
    %v590 = vpop.permute.xlu0 %589
    %593 = vset.pattern.permute.xlu0 0
    %594 = vperm.xlu0 %593, %v576
    %v595 = vpop.permute.xlu0 %594
    %v597 = vadd.f32 %v555, %v580
    %v598 = vadd.f32 %v560, %v585
    %v599 = vadd.f32 %v565, %v590
    %v600 = vadd.f32 %v570, %v595
    %v601 = vxor.u32 %v597, 2147483648
    %v602 = vxor.u32 %v598, 2147483648
    %v603 = vxor.u32 %v599, 2147483648
    %v604 = vxor.u32 %v600, 2147483648
    %v605 = vmul.f32 %v601, 1.442695
    %v606 = vpow.pop %v605
    %v607 = vmul.f32 %v602, 1.442695
    %v608 = vpow.pop %v607
    %v609 = vmul.f32 %v603, 1.442695
    %v610 = vpow.pop %v609
    %v611 = vmul.f32 %v604, 1.442695
    %v612 = vpow.pop %v611
    %v613 = vadd.f32 %v606, 1.0
    %v614 = vadd.f32 %v608, 1.0
    %v615 = vadd.f32 %v610, 1.0
    %v616 = vadd.f32 %v612, 1.0
    %v617 = vrcp.pop %v613
    %v618 = vmul.f32 1.0, %v617
    %v619 = vrcp.pop %v614
    %v620 = vmul.f32 1.0, %v619
    %v621 = vrcp.pop %v615
    %v622 = vmul.f32 1.0, %v621
    %v623 = vrcp.pop %v616
    %v624 = vmul.f32 1.0, %v623
    %v625 = vmul.f32 %v597, %v618
    %v626 = vmul.f32 %v598, %v620
    %v627 = vmul.f32 %v599, %v622
    %v628 = vmul.f32 %v600, %v624
    %v629 = vld [vmem:[%s9] sm:$0xff]
    %v630 = vld [vmem:[%s9 + $0x8] sm:$0xff]
    %v631 = vld [vmem:[%s9 + $0x10] sm:$0xff]
    %v632 = vld [vmem:[%s9 + $0x18] sm:$0xff]
    %v633 = vld [vmem:[%s10] sm:$0xff]
    %v634 = vld [vmem:[%s10 + $0x8] sm:$0xff]
    %v635 = vld [vmem:[%s10 + $0x10] sm:$0xff]
    %v636 = vld [vmem:[%s10 + $0x18] sm:$0xff]
    %638 = vset.pattern.permute.xlu0 0
    %639 = vperm.xlu0 %638, %v633
    %v640 = vpop.permute.xlu0 %639
    %643 = vset.pattern.permute.xlu0 0
    %644 = vperm.xlu0 %643, %v634
    %v645 = vpop.permute.xlu0 %644
    %648 = vset.pattern.permute.xlu0 0
    %649 = vperm.xlu0 %648, %v635
    %v650 = vpop.permute.xlu0 %649
    %653 = vset.pattern.permute.xlu0 0
    %654 = vperm.xlu0 %653, %v636
    %v655 = vpop.permute.xlu0 %654
    %v658 = vsel %vm244, %v629, 0
    %v661 = vsel %vm244, %v630, 0
    %v664 = vsel %vm244, %v631, 0
    %v667 = vsel %vm244, %v632, 0
    %669 = vmatprep.subr.mxu0 0.0
    %670 = vmatpush1.msra.mxu0 %v625
    %671 = vmatprep.subr.mxu0 0.0
    %672 = vmatpush1.msra.mxu0 %v626
    %673 = vmatprep.subr.mxu0 0.0
    %674 = vmatpush1.msra.mxu0 %v627
    %675 = vmatprep.subr.mxu0 0.0
    %676 = vmatpush1.msra.mxu0 %v628
    %677 = vmatprep.subr.mxu0 0.0
    %678 = vmatpush1.msra.mxu0 0.0
    %679 = vmatprep.subr.mxu0 0.0
    %680 = vmatpush1.msra.mxu0 0.0
    %681 = vmatprep.subr.mxu0 0.0
    %682 = vmatpush1.msra.mxu0 0.0
    %683 = vmatprep.subr.mxu0 0.0
    %684 = vmatpush1.msra.mxu0 0.0
    %685 = vmatprep.subr.mxu0 0.0
    %686 = vmatpush1.msra.mxu0 0.0
    %687 = vmatprep.subr.mxu0 0.0
    %688 = vmatpush1.msra.mxu0 0.0
    %689 = vmatprep.subr.mxu0 0.0
    %690 = vmatpush1.msra.mxu0 0.0
    %691 = vmatprep.subr.mxu0 0.0
    %692 = vmatpush1.msra.mxu0 0.0
    %693 = vmatprep.subr.mxu0 0.0
    %694 = vmatpush1.msra.mxu0 0.0
    %695 = vmatprep.subr.mxu0 0.0
    %696 = vmatpush1.msra.mxu0 0.0
    %697 = vmatprep.subr.mxu0 0.0
    %698 = vmatpush1.msra.mxu0 0.0
    %699 = vmatprep.subr.mxu0 0.0
    %700 = vmatpush1.msra.mxu0 0.0
    %701 = vmatprep.subr.mxu0 0.0
    %702 = vmatpush1.msra.mxu0 0.0
    %703 = vmatprep.subr.mxu0 0.0
    %704 = vmatpush1.msra.mxu0 0.0
    %705 = vmatprep.subr.mxu0 0.0
    %706 = vmatpush1.msra.mxu0 0.0
    %707 = vmatprep.subr.mxu0 0.0
    %708 = vmatpush1.msra.mxu0 0.0
    %709 = vmatprep.subr.mxu0 0.0
    %710 = vmatpush1.msra.mxu0 0.0
    %711 = vmatprep.subr.mxu0 0.0
    %712 = vmatpush1.msra.mxu0 0.0
    %713 = vmatprep.subr.mxu0 0.0
    %714 = vmatpush1.msra.mxu0 0.0
    %715 = vmatprep.subr.mxu0 0.0
    %716 = vmatpush1.msra.mxu0 0.0
    %717 = vmatprep.subr.mxu0 0.0
    %718 = vmatpush1.msra.mxu0 0.0
    %719 = vmatprep.subr.mxu0 0.0
    %720 = vmatpush1.msra.mxu0 0.0
    %721 = vmatprep.subr.mxu0 0.0
    %722 = vmatpush1.msra.mxu0 0.0
    %723 = vmatprep.subr.mxu0 0.0
    %724 = vmatpush1.msra.mxu0 0.0
    %725 = vmatprep.subr.mxu0 0.0
    %726 = vmatpush1.msra.mxu0 0.0
    %727 = vmatprep.subr.mxu0 0.0
    %728 = vmatpush1.msra.mxu0 0.0
    %729 = vmatprep.subr.mxu0 0.0
    %730 = vmatpush1.msra.mxu0 0.0
    %731 = vmatprep.subr.mxu0 0.0
    %732 = vmatpush1.msra.mxu0 0.0
    %733 = vmatprep.mubr.f32.mxu0 0.0
    %734 = vmatmul.mubr.f32.gmra.mrb[0].mxu0 %v658
    %v735 = vpop.f32.mrb[0].mxu0
    %v736 = vadd.f32 %v640, %v735
    %v737 = vpop.f32.mrb[0].mxu0
    %738 = vmatprep.mubr.f32.mxu0 0.0
    %739 = vmatmul.mubr.f32.gmra.mrb[0].mxu0 %v661
    %v740 = vpop.f32.mrb[0].mxu0
    %v741 = vadd.f32 %v645, %v740
    %v742 = vpop.f32.mrb[0].mxu0
    %743 = vmatprep.mubr.f32.mxu0 0.0
    %744 = vmatmul.mubr.f32.gmra.mrb[0].mxu0 %v664
    %v745 = vpop.f32.mrb[0].mxu0
    %v746 = vadd.f32 %v650, %v745
    %v747 = vpop.f32.mrb[0].mxu0
    %748 = vmatprep.mubr.f32.mxu0 0.0
    %749 = vmatmul.mubr.f32.gmra.mrb[0].mxu0 %v667
    %v750 = vpop.f32.mrb[0].mxu0
    %v751 = vadd.f32 %v655, %v750
    %v752 = vpop.f32.mrb[0].mxu0
    %753 = vdwg.mxu0
    %v754 = vxor.u32 %v736, 2147483648
    %v755 = vxor.u32 %v741, 2147483648
    %v756 = vxor.u32 %v746, 2147483648
    %v757 = vxor.u32 %v751, 2147483648
    %v758 = vmul.f32 %v754, 1.442695
    %v759 = vpow.pop %v758
    %v760 = vmul.f32 %v755, 1.442695
    %v761 = vpow.pop %v760
    %v762 = vmul.f32 %v756, 1.442695
    %v763 = vpow.pop %v762
    %v764 = vmul.f32 %v757, 1.442695
    %v765 = vpow.pop %v764
    %v766 = vadd.f32 %v759, 1.0
    %v767 = vadd.f32 %v761, 1.0
    %v768 = vadd.f32 %v763, 1.0
    %v769 = vadd.f32 %v765, 1.0
    %v770 = vrcp.pop %v766
    %v771 = vmul.f32 1.0, %v770
    %v772 = vrcp.pop %v767
    %v773 = vmul.f32 1.0, %v772
    %v774 = vrcp.pop %v768
    %v775 = vmul.f32 1.0, %v774
    %v776 = vrcp.pop %v769
    %v777 = vmul.f32 1.0, %v776
    %v778 = vmul.f32 %v736, %v771
    %v779 = vmul.f32 %v741, %v773
    %v780 = vmul.f32 %v746, %v775
    %v781 = vmul.f32 %v751, %v777
    %s782 = scalar_lea.vmem %s9, 32
    %v783 = vld [vmem:[%s782] sm:$0xff]
    %v784 = vld [vmem:[%s782 + $0x8] sm:$0xff]
    %v785 = vld [vmem:[%s782 + $0x10] sm:$0xff]
    %v786 = vld [vmem:[%s782 + $0x18] sm:$0xff]
    %s787 = scalar_lea.vmem %s10, 32
    %v788 = vld [vmem:[%s787] sm:$0xff]
    %v789 = vld [vmem:[%s787 + $0x8] sm:$0xff]
    %v790 = vld [vmem:[%s787 + $0x10] sm:$0xff]
    %v791 = vld [vmem:[%s787 + $0x18] sm:$0xff]
    %793 = vset.pattern.permute.xlu0 0
    %794 = vperm.xlu0 %793, %v788
    %v795 = vpop.permute.xlu0 %794
    %798 = vset.pattern.permute.xlu0 0
    %799 = vperm.xlu0 %798, %v789
    %v800 = vpop.permute.xlu0 %799
    %803 = vset.pattern.permute.xlu0 0
    %804 = vperm.xlu0 %803, %v790
    %v805 = vpop.permute.xlu0 %804
    %808 = vset.pattern.permute.xlu0 0
    %809 = vperm.xlu0 %808, %v791
    %v810 = vpop.permute.xlu0 %809
    %v813 = vsel %vm244, %v783, 0
    %v816 = vsel %vm244, %v784, 0
    %v819 = vsel %vm244, %v785, 0
    %v822 = vsel %vm244, %v786, 0
    %824 = vmatprep.subr.mxu0 0.0
    %825 = vmatpush1.msra.mxu0 %v778
    %826 = vmatprep.subr.mxu0 0.0
    %827 = vmatpush1.msra.mxu0 %v779
    %828 = vmatprep.subr.mxu0 0.0
    %829 = vmatpush1.msra.mxu0 %v780
    %830 = vmatprep.subr.mxu0 0.0
    %831 = vmatpush1.msra.mxu0 %v781
    %832 = vmatprep.subr.mxu0 0.0
    %833 = vmatpush1.msra.mxu0 0.0
    %834 = vmatprep.subr.mxu0 0.0
    %835 = vmatpush1.msra.mxu0 0.0
    %836 = vmatprep.subr.mxu0 0.0
    %837 = vmatpush1.msra.mxu0 0.0
    %838 = vmatprep.subr.mxu0 0.0
    %839 = vmatpush1.msra.mxu0 0.0
    %840 = vmatprep.subr.mxu0 0.0
    %841 = vmatpush1.msra.mxu0 0.0
    %842 = vmatprep.subr.mxu0 0.0
    %843 = vmatpush1.msra.mxu0 0.0
    %844 = vmatprep.subr.mxu0 0.0
    %845 = vmatpush1.msra.mxu0 0.0
    %846 = vmatprep.subr.mxu0 0.0
    %847 = vmatpush1.msra.mxu0 0.0
    %848 = vmatprep.subr.mxu0 0.0
    %849 = vmatpush1.msra.mxu0 0.0
    %850 = vmatprep.subr.mxu0 0.0
    %851 = vmatpush1.msra.mxu0 0.0
    %852 = vmatprep.subr.mxu0 0.0
    %853 = vmatpush1.msra.mxu0 0.0
    %854 = vmatprep.subr.mxu0 0.0
    %855 = vmatpush1.msra.mxu0 0.0
    %856 = vmatprep.subr.mxu0 0.0
    %857 = vmatpush1.msra.mxu0 0.0
    %858 = vmatprep.subr.mxu0 0.0
    %859 = vmatpush1.msra.mxu0 0.0
    %860 = vmatprep.subr.mxu0 0.0
    %861 = vmatpush1.msra.mxu0 0.0
    %862 = vmatprep.subr.mxu0 0.0
    %863 = vmatpush1.msra.mxu0 0.0
    %864 = vmatprep.subr.mxu0 0.0
    %865 = vmatpush1.msra.mxu0 0.0
    %866 = vmatprep.subr.mxu0 0.0
    %867 = vmatpush1.msra.mxu0 0.0
    %868 = vmatprep.subr.mxu0 0.0
    %869 = vmatpush1.msra.mxu0 0.0
    %870 = vmatprep.subr.mxu0 0.0
    %871 = vmatpush1.msra.mxu0 0.0
    %872 = vmatprep.subr.mxu0 0.0
    %873 = vmatpush1.msra.mxu0 0.0
    %874 = vmatprep.subr.mxu0 0.0
    %875 = vmatpush1.msra.mxu0 0.0
    %876 = vmatprep.subr.mxu0 0.0
    %877 = vmatpush1.msra.mxu0 0.0
    %878 = vmatprep.subr.mxu0 0.0
    %879 = vmatpush1.msra.mxu0 0.0
    %880 = vmatprep.subr.mxu0 0.0
    %881 = vmatpush1.msra.mxu0 0.0
    %882 = vmatprep.subr.mxu0 0.0
    %883 = vmatpush1.msra.mxu0 0.0
    %884 = vmatprep.subr.mxu0 0.0
    %885 = vmatpush1.msra.mxu0 0.0
    %886 = vmatprep.subr.mxu0 0.0
    %887 = vmatpush1.msra.mxu0 0.0
    %888 = vmatprep.mubr.f32.mxu0 0.0
    %889 = vmatmul.mubr.f32.gmra.mrb[0].mxu0 %v813
    %v890 = vpop.f32.mrb[0].mxu0
    %v891 = vadd.f32 %v795, %v890
    %v892 = vpop.f32.mrb[0].mxu0
    %893 = vmatprep.mubr.f32.mxu0 0.0
    %894 = vmatmul.mubr.f32.gmra.mrb[0].mxu0 %v816
    %v895 = vpop.f32.mrb[0].mxu0
    %v896 = vadd.f32 %v800, %v895
    %v897 = vpop.f32.mrb[0].mxu0
    %898 = vmatprep.mubr.f32.mxu0 0.0
    %899 = vmatmul.mubr.f32.gmra.mrb[0].mxu0 %v819
    %v900 = vpop.f32.mrb[0].mxu0
    %v901 = vadd.f32 %v805, %v900
    %v902 = vpop.f32.mrb[0].mxu0
    %903 = vmatprep.mubr.f32.mxu0 0.0
    %904 = vmatmul.mubr.f32.gmra.mrb[0].mxu0 %v822
    %v905 = vpop.f32.mrb[0].mxu0
    %v906 = vadd.f32 %v810, %v905
    %v907 = vpop.f32.mrb[0].mxu0
    %908 = vdwg.mxu0
    %v909 = vxor.u32 %v891, 2147483648
    %v910 = vxor.u32 %v896, 2147483648
    %v911 = vxor.u32 %v901, 2147483648
    %v912 = vxor.u32 %v906, 2147483648
    %v913 = vmul.f32 %v909, 1.442695
    %v914 = vpow.pop %v913
    %v915 = vmul.f32 %v910, 1.442695
    %v916 = vpow.pop %v915
    %v917 = vmul.f32 %v911, 1.442695
    %v918 = vpow.pop %v917
    %v919 = vmul.f32 %v912, 1.442695
    %v920 = vpow.pop %v919
    %v921 = vadd.f32 %v914, 1.0
    %v922 = vadd.f32 %v916, 1.0
    %v923 = vadd.f32 %v918, 1.0
    %v924 = vadd.f32 %v920, 1.0
    %v925 = vrcp.pop %v921
    %v926 = vmul.f32 1.0, %v925
    %v927 = vrcp.pop %v922
    %v928 = vmul.f32 1.0, %v927
    %v929 = vrcp.pop %v923
    %v930 = vmul.f32 1.0, %v929
    %v931 = vrcp.pop %v924
    %v932 = vmul.f32 1.0, %v931
    %v933 = vmul.f32 %v891, %v926
    %v934 = vmul.f32 %v896, %v928
    %v935 = vmul.f32 %v901, %v930
    %v936 = vmul.f32 %v906, %v932
    %v937 = vld [vmem:[%s11] sm:$0xff]
    %v939 = vsel %vm244, %v937, 0
    %941 = vmatprep.subr.mxu0 0.0
    %942 = vmatpush1.msra.mxu0 %v933
    %943 = vmatprep.subr.mxu0 0.0
    %944 = vmatpush1.msra.mxu0 %v934
    %945 = vmatprep.subr.mxu0 0.0
    %946 = vmatpush1.msra.mxu0 %v935
    %947 = vmatprep.subr.mxu0 0.0
    %948 = vmatpush1.msra.mxu0 %v936
    %949 = vmatprep.subr.mxu0 0.0
    %950 = vmatpush1.msra.mxu0 0.0
    %951 = vmatprep.subr.mxu0 0.0
    %952 = vmatpush1.msra.mxu0 0.0
    %953 = vmatprep.subr.mxu0 0.0
    %954 = vmatpush1.msra.mxu0 0.0
    %955 = vmatprep.subr.mxu0 0.0
    %956 = vmatpush1.msra.mxu0 0.0
    %957 = vmatprep.subr.mxu0 0.0
    %958 = vmatpush1.msra.mxu0 0.0
    %959 = vmatprep.subr.mxu0 0.0
    %960 = vmatpush1.msra.mxu0 0.0
    %961 = vmatprep.subr.mxu0 0.0
    %962 = vmatpush1.msra.mxu0 0.0
    %963 = vmatprep.subr.mxu0 0.0
    %964 = vmatpush1.msra.mxu0 0.0
    %965 = vmatprep.subr.mxu0 0.0
    %966 = vmatpush1.msra.mxu0 0.0
    %967 = vmatprep.subr.mxu0 0.0
    %968 = vmatpush1.msra.mxu0 0.0
    %969 = vmatprep.subr.mxu0 0.0
    %970 = vmatpush1.msra.mxu0 0.0
    %971 = vmatprep.subr.mxu0 0.0
    %972 = vmatpush1.msra.mxu0 0.0
    %973 = vmatprep.subr.mxu0 0.0
    %974 = vmatpush1.msra.mxu0 0.0
    %975 = vmatprep.subr.mxu0 0.0
    %976 = vmatpush1.msra.mxu0 0.0
    %977 = vmatprep.subr.mxu0 0.0
    %978 = vmatpush1.msra.mxu0 0.0
    %979 = vmatprep.subr.mxu0 0.0
    %980 = vmatpush1.msra.mxu0 0.0
    %981 = vmatprep.subr.mxu0 0.0
    %982 = vmatpush1.msra.mxu0 0.0
    %983 = vmatprep.subr.mxu0 0.0
    %984 = vmatpush1.msra.mxu0 0.0
    %985 = vmatprep.subr.mxu0 0.0
    %986 = vmatpush1.msra.mxu0 0.0
    %987 = vmatprep.subr.mxu0 0.0
    %988 = vmatpush1.msra.mxu0 0.0
    %989 = vmatprep.subr.mxu0 0.0
    %990 = vmatpush1.msra.mxu0 0.0
    %991 = vmatprep.subr.mxu0 0.0
    %992 = vmatpush1.msra.mxu0 0.0
    %993 = vmatprep.subr.mxu0 0.0
    %994 = vmatpush1.msra.mxu0 0.0
    %995 = vmatprep.subr.mxu0 0.0
    %996 = vmatpush1.msra.mxu0 0.0
    %997 = vmatprep.subr.mxu0 0.0
    %998 = vmatpush1.msra.mxu0 0.0
    %999 = vmatprep.subr.mxu0 0.0
    %1000 = vmatpush1.msra.mxu0 0.0
    %1001 = vmatprep.subr.mxu0 0.0
    %1002 = vmatpush1.msra.mxu0 0.0
    %1003 = vmatprep.subr.mxu0 0.0
    %1004 = vmatpush1.msra.mxu0 0.0
    %1005 = vmatprep.mubr.f32.mxu0 0.0
    %1006 = vmatmul.mubr.f32.gmra.mrb[0].mxu0 %v939
    %v1007 = vpop.f32.mrb[0].mxu0
    %v1008 = vadd.f32 0.0, %v1007
    %v1009 = vpop.f32.mrb[0].mxu0
    %1010 = vdwg.mxu0
    %v1011 = vld [vmem:[#allocation2] sm:$0x1]
    %1013 = vset.pattern.permute.xlu0 0
    %1014 = vperm.xlu0 %1013, %v1011
    %v1015 = vpop.permute.xlu0 %1014
    %v1017 = vlaneseq
    %v1018 = vshrl.u32 %v1017, 7
    %v1019 = vsub.s32 0, %v1018
    %v1020 = vrot.slane %v1015, %v1019
    %v1021 = vadd.f32 %v1008, %v1020
    %v1022 = vtanh.pop %v1021
    %v1023 = vmul.f32 %v1022, 5.0
    %1024 = vst [vmem:[#allocation3] sm:$0x1] %v1023
    // Predicated region
    $region54: #{tpu_custom_call.1} parent=1 // pred_check
      _
    $region55: #{tpu_custom_call.1} parent=1 // pred_check_branch
      %1026 = sbr.rel (0) target = $region57
    $region56: #{tpu_custom_call.1} parent=1 // pred_region
      %s1028 = ssub.s32 16, 16
      %1029 = vsyncadd [#allocation4], %s1028
      %s1031 = sshll.u32 [#allocation3], 4
      %s1032 = int_to_ptr.vmem [resolvable:$true] %s1031
      %1034 = dma.vmem_to_hbm [thread:$0]  %s1032, 16, %s13, [#allocation4]
    $region57: #{tpu_custom_call.1} parent=1 // pred_fallthru
      _
    // Predicated region
    $region58: #{tpu_custom_call.1} parent=1 // pred_check
      _
    $region59: #{tpu_custom_call.1} parent=1 // pred_check_branch
      %1036 = sbr.rel (0) target = $region61
    $region60: #{tpu_custom_call.1} parent=1 // pred_region
      %1037 = dma.done [#allocation4], 16
    $region61: #{tpu_custom_call.1} parent=1 // pred_fallthru
      _
    %1038 = vsyncpa [#allocation4], 1

</llo_original>
